<compile_context>
chip_gen: v6e
topology: v6e:2x2x1
jax: 0.10.0
libtpu: 0.0.40
codegen_flags: <defaults>
</compile_context>

<pallas_src>
import functools

import jax
import jax.numpy as jnp
from jax.experimental import pallas as pl
from jax.experimental.pallas import tpu as pltpu


# -----------------------------------------------------------------------------
# Hyper-parameters (mirrors CNN.__init__ arguments at small synthetic sizes)
# -----------------------------------------------------------------------------
P_CFG = {"dropout1": 0.5, "position_emb": 4, "units1": 32, "window_size": 3}
MAX_SENT_LEN = 16
N_OUT = 8
VOCAB = 24
WORD_EMB_DIM = 32
BATCH = 2

POS_VOCAB = 2 * MAX_SENT_LEN + 1                  # 33
C_IN = WORD_EMB_DIM + 2 * P_CFG["position_emb"]   # conv input channels = 40
UNITS = P_CFG["units1"]
K3, K5, K7 = P_CFG["window_size"], 5, 7

N_ROWS_PAD = 128      # packed embedding-table rows (90 used, padded lane-dense)
NEG_LARGE = -1e30     # mask value for invalid time positions (never wins the max)


# -----------------------------------------------------------------------------
# Pallas kernel: fused embedding + 3 Conv1d branches + max + tanh + linear
# -----------------------------------------------------------------------------
def _cnn_kernel(idx_ref, table_ref, wconv_ref, bconv_ref, lin_ref, out_ref, *,
                batch, seq_len, units, n_rows):
    L, U = seq_len, units
    BL = batch * L

    # ---- fused embedding gather: one one-hot, ONE matmul -----------------------
    # idx holds [sent, e0 + VOCAB, e1 + VOCAB + POS_VOCAB]; the three index ranges
    # are disjoint, so the sum of compares is an exact multi-hot row selecting the
    # word / pos0 / pos1 rows of the block-diagonal table simultaneously.
    idx = idx_ref[...]                                               # (BL, 3) int32
    iota = jax.lax.broadcasted_iota(jnp.int32, (BL, n_rows), 1)
    oh = ((idx[:, 0:1] == iota).astype(jnp.float32)
          + (idx[:, 1:2] == iota).astype(jnp.float32)
          + (idx[:, 2:3] == iota).astype(jnp.float32))               # (BL, n_rows)
    merged = jnp.dot(oh, table_ref[...],
                     preferred_element_type=jnp.float32)             # (BL, C)

    # ---- fused 3-branch Conv1d: roll-and-accumulate over the 7 taps ------------
    # packed output columns: [0,U) -> k=3 branch, [U,2U) -> k=5, [2U,3U) -> k=7.
    # pltpu.roll matches jnp.roll; shift (BL - k) == shift -k: row l <- row l + k.
    acc = jnp.dot(merged, wconv_ref[0], preferred_element_type=jnp.float32)
    for k in range(1, K7):
        xk = pltpu.roll(merged, (BL - k) % BL, axis=0)
        acc = acc + jnp.dot(xk, wconv_ref[k],
                            preferred_element_type=jnp.float32)      # (BL, 3U)

    # Rows whose taps cross a batch boundary (or wrap around) are exactly the
    # invalid time positions of each branch -> mask them before the max.
    row = jax.lax.broadcasted_iota(jnp.int32, (L, 3 * U), 0)
    col = jax.lax.broadcasted_iota(jnp.int32, (L, 3 * U), 1)
    valid_len = jnp.where(col < U, L - K3 + 1,
                          jnp.where(col < 2 * U, L - K5 + 1, L - K7 + 1))
    mask = row < valid_len                                           # (L, 3U)

    # batch-fused max over time: sublane-aligned split (L multiple of 8) + reduce
    s = jnp.where(mask[None, :, :], acc.reshape(batch, L, 3 * U), NEG_LARGE)
    feats = jnp.max(s, axis=1)                                       # (B, 3U)

    # bias is time-invariant -> adding after the max is equivalent (and cheaper);
    # dropout1 is identity in eval mode.
    feats = jnp.tanh(feats + bconv_ref[...])

    # final linear (no bias): one (B, 3U) @ (3U, n_out) matmul, single store
    out_ref[...] = jnp.dot(feats, lin_ref[...],
                           preferred_element_type=jnp.float32).astype(out_ref.dtype)


def cnn_forward_pallas(idx_packed, table, wconv, bconv, lin_w_t, *, batch, seq_len):
    n_out = lin_w_t.shape[-1]
    units = bconv.shape[-1] // 3

    kernel = functools.partial(
        _cnn_kernel, batch=batch, seq_len=seq_len, units=units,
        n_rows=table.shape[0])

    vmem = lambda: pl.BlockSpec(memory_space=pltpu.MemorySpace.VMEM)
    return pl.pallas_call(
        kernel,
        out_shape=jax.ShapeDtypeStruct((batch, n_out), jnp.float32),
        in_specs=[vmem() for _ in range(5)],
        out_specs=vmem(),
    )(idx_packed, table, wconv, bconv, lin_w_t)


# -----------------------------------------------------------------------------
# One-time parameter packing (hoisted out of the per-call path)
# -----------------------------------------------------------------------------
def pack_params(params):
    E, P, C, U = WORD_EMB_DIM, P_CFG["position_emb"], C_IN, UNITS

    # block-diagonal embedding table, rows padded lane-dense to N_ROWS_PAD
    table = jnp.zeros((N_ROWS_PAD, C), jnp.float32)
    table = table.at[:VOCAB, :E].set(params["word_emb"])
    table = table.at[VOCAB:VOCAB + POS_VOCAB, E:E + P].set(params["pos_emb_0"])
    table = table.at[VOCAB + POS_VOCAB:VOCAB + 2 * POS_VOCAB, E + P:].set(
        params["pos_emb_1"])

    # conv weights packed as (K7, C, 3U); missing taps of k=3 / k=5 are zero
    wconv = jnp.zeros((K7, C, 3 * U), jnp.float32)
    wconv = wconv.at[:K3, :, :U].set(params["w3"])
    wconv = wconv.at[:K5, :, U:2 * U].set(params["w5"])
    wconv = wconv.at[:, :, 2 * U:].set(params["w7"])

    bconv = jnp.concatenate([params["b3"], params["b5"], params["b7"]], axis=1)

    return dict(table=table, wconv=wconv, bconv=bconv, lin_w_t=params["lin_w_t"])


def cnn_model(packed, sentence_input, entity_markers):
    B, L = sentence_input.shape
    # single packed int32 index operand with pre-applied vocab offsets
    offs = jnp.array([0, VOCAB, VOCAB + POS_VOCAB], jnp.int32)
    idx = jnp.stack([sentence_input,
                     entity_markers[:, 0, :],
                     entity_markers[:, 1, :]], axis=-1).astype(jnp.int32)
    idx = idx.reshape(B * L, 3) + offs[None, :]

    return cnn_forward_pallas(idx, packed["table"], packed["wconv"],
                              packed["bconv"], packed["lin_w_t"],
                              batch=B, seq_len=L)


# -----------------------------------------------------------------------------
# Pure-JAX reference of the same forward pass (for a correctness check)
# -----------------------------------------------------------------------------
def cnn_model_ref(params, sentence_input, entity_markers):
    word_emb = params["word_emb"][sentence_input]
    pos0 = params["pos_emb_0"][entity_markers[:, 0, :]]
    pos1 = params["pos_emb_1"][entity_markers[:, 1, :]]
    merged = jnp.concatenate([word_emb, pos0, pos1], axis=2)          # (B, L, C)

    def conv_branch(w, b, k_size):
        L = merged.shape[1]
        l_out = L - k_size + 1
        acc = jnp.zeros((merged.shape[0], l_out, w.shape[-1]), jnp.float32)
        for k in range(k_size):
            acc = acc + jnp.einsum("blc,cu->blu", merged[:, k:k + l_out, :], w[k])
        acc = acc + b[None, :, :]
        return jnp.tanh(jnp.max(acc, axis=1))                         # (B, U)

    f3 = conv_branch(params["w3"], params["b3"], K3)
    f5 = conv_branch(params["w5"], params["b5"], K5)
    f7 = conv_branch(params["w7"], params["b7"], K7)
    feats = jnp.concatenate([f3, f5, f7], axis=1)                     # (B, 3U)
    return feats @ params["lin_w_t"]


# -----------------------------------------------------------------------------
# Deterministic parameter initialization (shapes from CNN.__init__)
# -----------------------------------------------------------------------------
def init_params(key):
    ks = jax.random.split(key, 8)

    def xavier(k, shape, fan_in, fan_out):
        limit = jnp.sqrt(6.0 / (fan_in + fan_out))
        return jax.random.uniform(k, shape, jnp.float32, -limit, limit)

    word_emb = jax.random.normal(ks[0], (VOCAB, WORD_EMB_DIM), jnp.float32) * 0.1
    word_emb = word_emb.at[0].set(0.0)                      # padding_idx=0
    pos_emb_0 = jax.random.normal(ks[1], (POS_VOCAB, P_CFG["position_emb"]),
                                  jnp.float32) * 0.1
    pos_emb_0 = pos_emb_0.at[0].set(0.0)
    pos_emb_1 = jax.random.normal(ks[2], (POS_VOCAB, P_CFG["position_emb"]),
                                  jnp.float32) * 0.1
    pos_emb_1 = pos_emb_1.at[0].set(0.0)

    # Conv weights stored as (K, C, U); equivalent to PyTorch (U, C, K) permuted.
    w3 = xavier(ks[3], (K3, C_IN, UNITS), C_IN * K3, UNITS)
    w5 = xavier(ks[4], (K5, C_IN, UNITS), C_IN * K5, UNITS)
    w7 = xavier(ks[5], (K7, C_IN, UNITS), C_IN * K7, UNITS)
    b3 = jnp.zeros((1, UNITS), jnp.float32)
    b5 = jnp.zeros((1, UNITS), jnp.float32)
    b7 = jnp.zeros((1, UNITS), jnp.float32)

    # Linear weight stored transposed: (3U, n_out)
    lin_w_t = xavier(ks[6], (3 * UNITS, N_OUT), 3 * UNITS, N_OUT)

    return dict(word_emb=word_emb, pos_emb_0=pos_emb_0, pos_emb_1=pos_emb_1,
                w3=w3, b3=b3, w5=w5, b5=b5, w7=w7, b7=b7, lin_w_t=lin_w_t)


if __name__ == "__main__":
    key = jax.random.PRNGKey(0)
    k_param, k_sent, k_ent = jax.random.split(key, 3)

    params = init_params(k_param)
    packed = pack_params(params)          # one-time host-side packing

    sentence_input = jax.random.randint(k_sent, (BATCH, MAX_SENT_LEN),
                                        0, VOCAB, jnp.int32)
    entity_markers = jax.random.randint(k_ent, (BATCH, 2, MAX_SENT_LEN),
                                        0, POS_VOCAB, jnp.int32)

    out = cnn_model(packed, sentence_input, entity_markers)
    out = jax.block_until_ready(out)

    ref = cnn_model_ref(params, sentence_input, entity_markers)
    assert out.shape == (BATCH, N_OUT)
    assert jnp.allclose(out, ref, atol=1e-4, rtol=1e-4), "mismatch vs reference"

    print("KERNEL_OK")
</pallas_src>

<mosaic_0001>
module attributes {stable_mosaic.version = 11 : i64} {
  func.func @_cnn_kernel(%arg0: memref<32x3xi32, #tpu.memory_space<vmem>>, %arg1: memref<128x40xf32, #tpu.memory_space<vmem>>, %arg2: memref<7x40x96xf32, #tpu.memory_space<vmem>>, %arg3: memref<1x96xf32, #tpu.memory_space<vmem>>, %arg4: memref<96x8xf32, #tpu.memory_space<vmem>>, %arg5: memref<2x8xf32, #tpu.memory_space<vmem>>) attributes {dimension_semantics = [], scalar_prefetch = 0 : i64, scratch_operands = 0 : i64, tpu.core_type = #tpu.core_type<tc>} {
    %c0 = arith.constant 0 : index
    %c0_0 = arith.constant 0 : index
    %0 = vector.load %arg0[%c0, %c0_0] : memref<32x3xi32, #tpu.memory_space<vmem>>, vector<32x3xi32>
    %1 = tpu.iota {dimensions = array<i32: 1>} : vector<32x128xi32>
    %2 = vector.extract_strided_slice %0 {offsets = [0, 0], sizes = [32, 1], strides = [1, 1]} : vector<32x3xi32> to vector<32x1xi32>
    %3 = vector.broadcast %2 : vector<32x1xi32> to vector<32x128xi32>
    %4 = arith.cmpi eq, %3, %1 : vector<32x128xi32>
    %5 = arith.extui %4 : vector<32x128xi1> to vector<32x128xi32>
    %6 = arith.sitofp %5 : vector<32x128xi32> to vector<32x128xf32>
    %7 = vector.extract_strided_slice %0 {offsets = [0, 1], sizes = [32, 1], strides = [1, 1]} : vector<32x3xi32> to vector<32x1xi32>
    %8 = vector.broadcast %7 : vector<32x1xi32> to vector<32x128xi32>
    %9 = arith.cmpi eq, %8, %1 : vector<32x128xi32>
    %10 = arith.extui %9 : vector<32x128xi1> to vector<32x128xi32>
    %11 = arith.sitofp %10 : vector<32x128xi32> to vector<32x128xf32>
    %12 = arith.addf %6, %11 : vector<32x128xf32>
    %13 = vector.extract_strided_slice %0 {offsets = [0, 2], sizes = [32, 1], strides = [1, 1]} : vector<32x3xi32> to vector<32x1xi32>
    %14 = vector.broadcast %13 : vector<32x1xi32> to vector<32x128xi32>
    %15 = arith.cmpi eq, %14, %1 : vector<32x128xi32>
    %16 = arith.extui %15 : vector<32x128xi1> to vector<32x128xi32>
    %17 = arith.sitofp %16 : vector<32x128xi32> to vector<32x128xf32>
    %18 = arith.addf %12, %17 : vector<32x128xf32>
    %c0_1 = arith.constant 0 : index
    %c0_2 = arith.constant 0 : index
    %19 = vector.load %arg1[%c0_1, %c0_2] : memref<128x40xf32, #tpu.memory_space<vmem>>, vector<128x40xf32>
    %cst = arith.constant dense<0.000000e+00> : vector<32x40xf32>
    %20 = tpu.matmul %18, %19, %cst {dimension_numbers = #tpu.dot_dimension_numbers<[1], [0], [0], [1], [0, 0, 1, 1], [], []>} : vector<32x128xf32>, vector<128x40xf32>, vector<32x40xf32> -> vector<32x40xf32>
    %c0_3 = arith.constant 0 : index
    %c0_4 = arith.constant 0 : index
    %c0_5 = arith.constant 0 : index
    %21 = vector.load %arg2[%c0_3, %c0_4, %c0_5] : memref<7x40x96xf32, #tpu.memory_space<vmem>>, vector<1x40x96xf32>
    %22 = vector.shape_cast %21 : vector<1x40x96xf32> to vector<40x96xf32>
    %cst_6 = arith.constant dense<0.000000e+00> : vector<32x96xf32>
    %23 = tpu.matmul %20, %22, %cst_6 {dimension_numbers = #tpu.dot_dimension_numbers<[1], [0], [0], [1], [0, 0, 1, 1], [], []>} : vector<32x40xf32>, vector<40x96xf32>, vector<32x96xf32> -> vector<32x96xf32>
    %c31_i32 = arith.constant 31 : i32
    %24 = tpu.dynamic_rotate %20 by %c31_i32 dim 0 : vector<32x40xf32>, i32 -> vector<32x40xf32>
    %c1 = arith.constant 1 : index
    %c0_7 = arith.constant 0 : index
    %c0_8 = arith.constant 0 : index
    %25 = vector.load %arg2[%c1, %c0_7, %c0_8] : memref<7x40x96xf32, #tpu.memory_space<vmem>>, vector<1x40x96xf32>
    %26 = vector.shape_cast %25 : vector<1x40x96xf32> to vector<40x96xf32>
    %cst_9 = arith.constant dense<0.000000e+00> : vector<32x96xf32>
    %27 = tpu.matmul %24, %26, %cst_9 {dimension_numbers = #tpu.dot_dimension_numbers<[1], [0], [0], [1], [0, 0, 1, 1], [], []>} : vector<32x40xf32>, vector<40x96xf32>, vector<32x96xf32> -> vector<32x96xf32>
    %28 = arith.addf %23, %27 : vector<32x96xf32>
    %c30_i32 = arith.constant 30 : i32
    %29 = tpu.dynamic_rotate %20 by %c30_i32 dim 0 : vector<32x40xf32>, i32 -> vector<32x40xf32>
    %c2 = arith.constant 2 : index
    %c0_10 = arith.constant 0 : index
    %c0_11 = arith.constant 0 : index
    %30 = vector.load %arg2[%c2, %c0_10, %c0_11] : memref<7x40x96xf32, #tpu.memory_space<vmem>>, vector<1x40x96xf32>
    %31 = vector.shape_cast %30 : vector<1x40x96xf32> to vector<40x96xf32>
    %cst_12 = arith.constant dense<0.000000e+00> : vector<32x96xf32>
    %32 = tpu.matmul %29, %31, %cst_12 {dimension_numbers = #tpu.dot_dimension_numbers<[1], [0], [0], [1], [0, 0, 1, 1], [], []>} : vector<32x40xf32>, vector<40x96xf32>, vector<32x96xf32> -> vector<32x96xf32>
    %33 = arith.addf %28, %32 : vector<32x96xf32>
    %c29_i32 = arith.constant 29 : i32
    %34 = tpu.dynamic_rotate %20 by %c29_i32 dim 0 : vector<32x40xf32>, i32 -> vector<32x40xf32>
    %c3 = arith.constant 3 : index
    %c0_13 = arith.constant 0 : index
    %c0_14 = arith.constant 0 : index
    %35 = vector.load %arg2[%c3, %c0_13, %c0_14] : memref<7x40x96xf32, #tpu.memory_space<vmem>>, vector<1x40x96xf32>
    %36 = vector.shape_cast %35 : vector<1x40x96xf32> to vector<40x96xf32>
    %cst_15 = arith.constant dense<0.000000e+00> : vector<32x96xf32>
    %37 = tpu.matmul %34, %36, %cst_15 {dimension_numbers = #tpu.dot_dimension_numbers<[1], [0], [0], [1], [0, 0, 1, 1], [], []>} : vector<32x40xf32>, vector<40x96xf32>, vector<32x96xf32> -> vector<32x96xf32>
    %38 = arith.addf %33, %37 : vector<32x96xf32>
    %c28_i32 = arith.constant 28 : i32
    %39 = tpu.dynamic_rotate %20 by %c28_i32 dim 0 : vector<32x40xf32>, i32 -> vector<32x40xf32>
    %c4 = arith.constant 4 : index
    %c0_16 = arith.constant 0 : index
    %c0_17 = arith.constant 0 : index
    %40 = vector.load %arg2[%c4, %c0_16, %c0_17] : memref<7x40x96xf32, #tpu.memory_space<vmem>>, vector<1x40x96xf32>
    %41 = vector.shape_cast %40 : vector<1x40x96xf32> to vector<40x96xf32>
    %cst_18 = arith.constant dense<0.000000e+00> : vector<32x96xf32>
    %42 = tpu.matmul %39, %41, %cst_18 {dimension_numbers = #tpu.dot_dimension_numbers<[1], [0], [0], [1], [0, 0, 1, 1], [], []>} : vector<32x40xf32>, vector<40x96xf32>, vector<32x96xf32> -> vector<32x96xf32>
    %43 = arith.addf %38, %42 : vector<32x96xf32>
    %c27_i32 = arith.constant 27 : i32
    %44 = tpu.dynamic_rotate %20 by %c27_i32 dim 0 : vector<32x40xf32>, i32 -> vector<32x40xf32>
    %c5 = arith.constant 5 : index
    %c0_19 = arith.constant 0 : index
    %c0_20 = arith.constant 0 : index
    %45 = vector.load %arg2[%c5, %c0_19, %c0_20] : memref<7x40x96xf32, #tpu.memory_space<vmem>>, vector<1x40x96xf32>
    %46 = vector.shape_cast %45 : vector<1x40x96xf32> to vector<40x96xf32>
    %cst_21 = arith.constant dense<0.000000e+00> : vector<32x96xf32>
    %47 = tpu.matmul %44, %46, %cst_21 {dimension_numbers = #tpu.dot_dimension_numbers<[1], [0], [0], [1], [0, 0, 1, 1], [], []>} : vector<32x40xf32>, vector<40x96xf32>, vector<32x96xf32> -> vector<32x96xf32>
    %48 = arith.addf %43, %47 : vector<32x96xf32>
    %c26_i32 = arith.constant 26 : i32
    %49 = tpu.dynamic_rotate %20 by %c26_i32 dim 0 : vector<32x40xf32>, i32 -> vector<32x40xf32>
    %c6 = arith.constant 6 : index
    %c0_22 = arith.constant 0 : index
    %c0_23 = arith.constant 0 : index
    %50 = vector.load %arg2[%c6, %c0_22, %c0_23] : memref<7x40x96xf32, #tpu.memory_space<vmem>>, vector<1x40x96xf32>
    %51 = vector.shape_cast %50 : vector<1x40x96xf32> to vector<40x96xf32>
    %cst_24 = arith.constant dense<0.000000e+00> : vector<32x96xf32>
    %52 = tpu.matmul %49, %51, %cst_24 {dimension_numbers = #tpu.dot_dimension_numbers<[1], [0], [0], [1], [0, 0, 1, 1], [], []>} : vector<32x40xf32>, vector<40x96xf32>, vector<32x96xf32> -> vector<32x96xf32>
    %53 = arith.addf %48, %52 : vector<32x96xf32>
    %54 = tpu.iota {dimensions = array<i32: 0>} : vector<16x96xi32>
    %55 = tpu.iota {dimensions = array<i32: 1>} : vector<16x96xi32>
    %c32_i32 = arith.constant 32 : i32
    %56 = vector.broadcast %c32_i32 : i32 to vector<16x96xi32>
    %57 = arith.cmpi slt, %55, %56 : vector<16x96xi32>
    %c64_i32 = arith.constant 64 : i32
    %58 = vector.broadcast %c64_i32 : i32 to vector<16x96xi32>
    %59 = arith.cmpi slt, %55, %58 : vector<16x96xi32>
    %c12_i32 = arith.constant 12 : i32
    %c10_i32 = arith.constant 10 : i32
    %60 = vector.broadcast %c12_i32 : i32 to vector<16x96xi32>
    %61 = vector.broadcast %c10_i32 : i32 to vector<16x96xi32>
    %62 = arith.select %59, %60, %61 : vector<16x96xi1>, vector<16x96xi32>
    %c14_i32 = arith.constant 14 : i32
    %63 = vector.broadcast %c14_i32 : i32 to vector<16x96xi32>
    %64 = arith.select %57, %63, %62 : vector<16x96xi1>, vector<16x96xi32>
    %65 = arith.cmpi slt, %54, %64 : vector<16x96xi32>
    %66 = vector.shape_cast %65 : vector<16x96xi1> to vector<1x16x96xi1>
    %67 = vector.shape_cast %53 : vector<32x96xf32> to vector<2x16x96xf32>
    %cst_25 = arith.constant -1.000000e+30 : f32
    %68 = vector.shape_cast %66 : vector<1x16x96xi1> to vector<1x16x96xi1>
    %69 = vector.broadcast %68 : vector<1x16x96xi1> to vector<2x16x96xi1>
    %70 = vector.broadcast %cst_25 : f32 to vector<2x16x96xf32>
    %71 = arith.select %69, %67, %70 : vector<2x16x96xi1>, vector<2x16x96xf32>
    %cst_26 = arith.constant dense<0xFF800000> : vector<2x96xf32>
    %72 = vector.multi_reduction <maximumf>, %71, %cst_26 [1] : vector<2x16x96xf32> to vector<2x96xf32>
    %c0_27 = arith.constant 0 : index
    %c0_28 = arith.constant 0 : index
    %73 = vector.load %arg3[%c0_27, %c0_28] : memref<1x96xf32, #tpu.memory_space<vmem>>, vector<1x96xf32>
    %74 = vector.broadcast %73 : vector<1x96xf32> to vector<2x96xf32>
    %75 = arith.addf %72, %74 : vector<2x96xf32>
    %76 = math.tanh %75 : vector<2x96xf32>
    %c0_29 = arith.constant 0 : index
    %c0_30 = arith.constant 0 : index
    %77 = vector.load %arg4[%c0_29, %c0_30] : memref<96x8xf32, #tpu.memory_space<vmem>>, vector<96x8xf32>
    %cst_31 = arith.constant dense<0.000000e+00> : vector<2x8xf32>
    %78 = tpu.matmul %76, %77, %cst_31 {dimension_numbers = #tpu.dot_dimension_numbers<[1], [0], [0], [1], [0, 0, 1, 1], [], []>} : vector<2x96xf32>, vector<96x8xf32>, vector<2x8xf32> -> vector<2x8xf32>
    %c0_32 = arith.constant 0 : index
    %c0_33 = arith.constant 0 : index
    %79 = vector.load %arg5[%c0_32, %c0_33] : memref<2x8xf32, #tpu.memory_space<vmem>>, vector<2x8xf32>
    tpu.vector_store %arg5[%c0_32, %c0_33], %78 {strides = array<i32>} : memref<2x8xf32, #tpu.memory_space<vmem>>, vector<2x8xf32>,
    return
  }
}

</mosaic_0001>

<llo_original>
// kernel: tpu_custom_call.1
$region0: #{tpu_custom_call.1}
  #allocation0 [shape = 'u32[]', space=smem, size = 0x4, offset = 0x4, fixed_abs, tag = 'smem constant byte address 0x4 - core index']
  #allocation1 [shape = 'u32[144,128]{1,0:T(1,128)}', space=vmem, size = 0x12000, scoped, tag = 'internal scratch']
  %s0 = inlined_call_operand.vmem [shape: s32[32,3], index: 0, kind: input, shape index: {}]
  %s1 = inlined_call_operand.vmem [shape: f32[128,40], index: 1, kind: input, shape index: {}]
  %s2 = inlined_call_operand.vmem [shape: f32[7,40,96], index: 2, kind: input, shape index: {}]
  %s3 = inlined_call_operand.vmem [shape: f32[1,96], index: 3, kind: input, shape index: {}]
  %s4 = inlined_call_operand.vmem [shape: f32[96,8], index: 4, kind: input, shape index: {}]
  %s5 = inlined_call_operand.hbm [shape: f32[2,8], index: 5, kind: output, shape index: {}]
  %s6 = sld [smem:[#allocation0]]
  $region30: #{tpu_custom_call.1} parent=0
    _
  %s8 = ssub.s32 1, %s6
  %s9 = scalar_select 0, %s8, %s6
  $region1: #{tpu_custom_call.1} parent=0
    #allocation2 [shape = 'u8[1024]{0}', space=vmem, size = 0x400, scoped, tag = 'output window, operand 0, single buffered']
    #allocation3 [shape = 's32[1]{0}', space=sflag, size = 0x4, scoped, tag = 'scoped memory for tpu_custom_call.1']
    %10 = vsyncpa [#allocation3], 0
    // Predicated region
    $region2: #{tpu_custom_call.1} parent=1 // pred_check
      _
    $region3: #{tpu_custom_call.1} parent=1 // pred_check_branch
      %12 = sbr.rel (0) target = $region5
    $region4: #{tpu_custom_call.1} parent=1 // pred_region
      _
    $region5: #{tpu_custom_call.1} parent=1 // pred_fallthru
      _
    // Predicated region
    $region6: #{tpu_custom_call.1} parent=1 // pred_check
      _
    $region7: #{tpu_custom_call.1} parent=1 // pred_check_branch
      %14 = sbr.rel (0) target = $region9
    $region8: #{tpu_custom_call.1} parent=1 // pred_region
      _
    $region9: #{tpu_custom_call.1} parent=1 // pred_fallthru
      _
    // Predicated region
    $region10: #{tpu_custom_call.1} parent=1 // pred_check
      _
    $region11: #{tpu_custom_call.1} parent=1 // pred_check_branch
      %16 = sbr.rel (0) target = $region13
    $region12: #{tpu_custom_call.1} parent=1 // pred_region
      _
    $region13: #{tpu_custom_call.1} parent=1 // pred_fallthru
      _
    // Predicated region
    $region14: #{tpu_custom_call.1} parent=1 // pred_check
      _
    $region15: #{tpu_custom_call.1} parent=1 // pred_check_branch
      %18 = sbr.rel (0) target = $region17
    $region16: #{tpu_custom_call.1} parent=1 // pred_region
      _
    $region17: #{tpu_custom_call.1} parent=1 // pred_fallthru
      _
    // Predicated region
    $region18: #{tpu_custom_call.1} parent=1 // pred_check
      _
    $region19: #{tpu_custom_call.1} parent=1 // pred_check_branch
      %20 = sbr.rel (0) target = $region21
    $region20: #{tpu_custom_call.1} parent=1 // pred_region
      _
    $region21: #{tpu_custom_call.1} parent=1 // pred_fallthru
      _
    %v21 = vld [vmem:[%s0] sm:$0xff]
    %v22 = vld [vmem:[%s0 + $0x8] sm:$0xff]
    %v23 = vld [vmem:[%s0 + $0x10] sm:$0xff]
    %v24 = vld [vmem:[%s0 + $0x18] sm:$0xff]
    %v25 = vlaneseq
    %v26 = vand.u32 %v25, 127
    %27 = vset.pattern.permute.xlu0 0
    %28 = vperm.xlu0 %27, %v21
    %v29 = vpop.permute.xlu0 %28
    %30 = vset.pattern.permute.xlu0 0
    %31 = vperm.xlu0 %30, %v22
    %v32 = vpop.permute.xlu0 %31
    %33 = vset.pattern.permute.xlu0 0
    %34 = vperm.xlu0 %33, %v23
    %v35 = vpop.permute.xlu0 %34
    %36 = vset.pattern.permute.xlu0 0
    %37 = vperm.xlu0 %36, %v24
    %v38 = vpop.permute.xlu0 %37
    %vm39 = vcmp.eq.s32.totalorder %v29, %v26
    %vm40 = vcmp.eq.s32.totalorder %v32, %v26
    %vm41 = vcmp.eq.s32.totalorder %v35, %v26
    %vm42 = vcmp.eq.s32.totalorder %v38, %v26
    %v43 = vsel %vm39, 1, 0
    %v44 = vsel %vm40, 1, 0
    %v45 = vsel %vm41, 1, 0
    %v46 = vsel %vm42, 1, 0
    %v47 = vcvt.s32.f32 %v43
    %v48 = vcvt.s32.f32 %v44
    %v49 = vcvt.s32.f32 %v45
    %v50 = vcvt.s32.f32 %v46
    %51 = vset.pattern.permute.xlu0 1
    %52 = vperm.xlu0 %51, %v21
    %v53 = vpop.permute.xlu0 %52
    %54 = vset.pattern.permute.xlu0 1
    %55 = vperm.xlu0 %54, %v22
    %v56 = vpop.permute.xlu0 %55
    %57 = vset.pattern.permute.xlu0 1
    %58 = vperm.xlu0 %57, %v23
    %v59 = vpop.permute.xlu0 %58
    %60 = vset.pattern.permute.xlu0 1
    %61 = vperm.xlu0 %60, %v24
    %v62 = vpop.permute.xlu0 %61
    %vm63 = vcmp.eq.s32.totalorder %v53, %v26
    %vm64 = vcmp.eq.s32.totalorder %v56, %v26
    %vm65 = vcmp.eq.s32.totalorder %v59, %v26
    %vm66 = vcmp.eq.s32.totalorder %v62, %v26
    %v67 = vsel %vm63, 1, 0
    %v68 = vsel %vm64, 1, 0
    %v69 = vsel %vm65, 1, 0
    %v70 = vsel %vm66, 1, 0
    %v71 = vcvt.s32.f32 %v67
    %v72 = vcvt.s32.f32 %v68
    %v73 = vcvt.s32.f32 %v69
    %v74 = vcvt.s32.f32 %v70
    %v75 = vadd.f32 %v47, %v71
    %v76 = vadd.f32 %v48, %v72
    %v77 = vadd.f32 %v49, %v73
    %v78 = vadd.f32 %v50, %v74
    %79 = vset.pattern.permute.xlu0 2
    %80 = vperm.xlu0 %79, %v21
    %v81 = vpop.permute.xlu0 %80
    %82 = vset.pattern.permute.xlu0 2
    %83 = vperm.xlu0 %82, %v22
    %v84 = vpop.permute.xlu0 %83
    %85 = vset.pattern.permute.xlu0 2
    %86 = vperm.xlu0 %85, %v23
    %v87 = vpop.permute.xlu0 %86
    %88 = vset.pattern.permute.xlu0 2
    %89 = vperm.xlu0 %88, %v24
    %v90 = vpop.permute.xlu0 %89
    %vm91 = vcmp.eq.s32.totalorder %v81, %v26
    %vm92 = vcmp.eq.s32.totalorder %v84, %v26
    %vm93 = vcmp.eq.s32.totalorder %v87, %v26
    %vm94 = vcmp.eq.s32.totalorder %v90, %v26
    %v95 = vsel %vm91, 1, 0
    %v96 = vsel %vm92, 1, 0
    %v97 = vsel %vm93, 1, 0
    %v98 = vsel %vm94, 1, 0
    %v99 = vcvt.s32.f32 %v95
    %v100 = vcvt.s32.f32 %v96
    %v101 = vcvt.s32.f32 %v97
    %v102 = vcvt.s32.f32 %v98
    %v103 = vadd.f32 %v75, %v99
    %v104 = vadd.f32 %v76, %v100
    %v105 = vadd.f32 %v77, %v101
    %v106 = vadd.f32 %v78, %v102
    %v107 = vld [vmem:[%s1] sm:$0xff]
    %v108 = vld [vmem:[%s1 + $0x8] sm:$0xff]
    %v109 = vld [vmem:[%s1 + $0x10] sm:$0xff]
    %v110 = vld [vmem:[%s1 + $0x18] sm:$0xff]
    %v111 = vld [vmem:[%s1 + $0x20] sm:$0xff]
    %v112 = vld [vmem:[%s1 + $0x28] sm:$0xff]
    %v113 = vld [vmem:[%s1 + $0x30] sm:$0xff]
    %v114 = vld [vmem:[%s1 + $0x38] sm:$0xff]
    %v115 = vld [vmem:[%s1 + $0x40] sm:$0xff]
    %v116 = vld [vmem:[%s1 + $0x48] sm:$0xff]
    %v117 = vld [vmem:[%s1 + $0x50] sm:$0xff]
    %v118 = vld [vmem:[%s1 + $0x58] sm:$0xff]
    %v119 = vld [vmem:[%s1 + $0x60] sm:$0xff]
    %v120 = vld [vmem:[%s1 + $0x68] sm:$0xff]
    %v121 = vld [vmem:[%s1 + $0x70] sm:$0xff]
    %v122 = vld [vmem:[%s1 + $0x78] sm:$0xff]
    %123 = vmatprep.subr.mxu0 0.0
    %124 = vmatpush1.msra.mxu0 %v122
    %125 = vmatprep.subr.mxu0 0.0
    %126 = vmatpush1.msra.mxu0 %v121
    %127 = vmatprep.subr.mxu0 0.0
    %128 = vmatpush1.msra.mxu0 %v120
    %129 = vmatprep.subr.mxu0 0.0
    %130 = vmatpush1.msra.mxu0 %v119
    %131 = vmatprep.subr.mxu0 0.0
    %132 = vmatpush1.msra.mxu0 %v118
    %133 = vmatprep.subr.mxu0 0.0
    %134 = vmatpush1.msra.mxu0 %v117
    %135 = vmatprep.subr.mxu0 0.0
    %136 = vmatpush1.msra.mxu0 %v116
    %137 = vmatprep.subr.mxu0 0.0
    %138 = vmatpush1.msra.mxu0 %v115
    %139 = vmatprep.subr.mxu0 0.0
    %140 = vmatpush1.msra.mxu0 %v114
    %141 = vmatprep.subr.mxu0 0.0
    %142 = vmatpush1.msra.mxu0 %v113
    %143 = vmatprep.subr.mxu0 0.0
    %144 = vmatpush1.msra.mxu0 %v112
    %145 = vmatprep.subr.mxu0 0.0
    %146 = vmatpush1.msra.mxu0 %v111
    %147 = vmatprep.subr.mxu0 0.0
    %148 = vmatpush1.msra.mxu0 %v110
    %149 = vmatprep.subr.mxu0 0.0
    %150 = vmatpush1.msra.mxu0 %v109
    %151 = vmatprep.subr.mxu0 0.0
    %152 = vmatpush1.msra.mxu0 %v108
    %153 = vmatprep.subr.mxu0 0.0
    %154 = vmatpush1.msra.mxu0 %v107
    %155 = vmatprep.subr.mxu0 0.0
    %156 = vmatpush2.msra.mxu0 0.0
    %157 = vmatprep.subr.mxu0 0.0
    %158 = vmatpush2.msra.mxu0 0.0
    %159 = vmatprep.subr.mxu0 0.0
    %160 = vmatpush2.msra.mxu0 0.0
    %161 = vmatprep.subr.mxu0 0.0
    %162 = vmatpush2.msra.mxu0 0.0
    %163 = vmatprep.subr.mxu0 0.0
    %164 = vmatpush2.msra.mxu0 0.0
    %165 = vmatprep.subr.mxu0 0.0
    %166 = vmatpush2.msra.mxu0 0.0
    %167 = vmatprep.subr.mxu0 0.0
    %168 = vmatpush2.msra.mxu0 0.0
    %169 = vmatprep.subr.mxu0 0.0
    %170 = vmatpush2.msra.mxu0 0.0
    %171 = vmatprep.subr.mxu0 0.0
    %172 = vmatpush2.msra.mxu0 0.0
    %173 = vmatprep.subr.mxu0 0.0
    %174 = vmatpush2.msra.mxu0 0.0
    %175 = vmatprep.subr.mxu0 0.0
    %176 = vmatpush2.msra.mxu0 0.0
    %177 = vmatprep.subr.mxu0 0.0
    %178 = vmatpush2.msra.mxu0 0.0
    %179 = vmatprep.subr.mxu0 0.0
    %180 = vmatpush2.msra.mxu0 0.0
    %181 = vmatprep.subr.mxu0 0.0
    %182 = vmatpush2.msra.mxu0 0.0
    %183 = vmatprep.subr.mxu0 0.0
    %184 = vmatpush2.msra.mxu0 0.0
    %185 = vmatprep.subr.mxu0 0.0
    %186 = vmatpush2.msra.mxu0 0.0
    %187 = vmatprep.mubr.f32.mxu0 0.0
    %188 = vmatmul.mubr.f32.gmra.mxu0 %v103
    %v189 = vpop.f32.mrf.mxu0
    %v190 = vadd.f32 0.0, %v189
    %v191 = vpop.f32.mrf.mxu0
    %192 = vmatprep.mubr.f32.mxu0 0.0
    %193 = vmatmul.mubr.f32.gmra.mxu0 %v104
    %v194 = vpop.f32.mrf.mxu0
    %v195 = vadd.f32 0.0, %v194
    %v196 = vpop.f32.mrf.mxu0
    %197 = vmatprep.mubr.f32.mxu0 0.0
    %198 = vmatmul.mubr.f32.gmra.mxu0 %v105
    %v199 = vpop.f32.mrf.mxu0
    %v200 = vadd.f32 0.0, %v199
    %v201 = vpop.f32.mrf.mxu0
    %202 = vmatprep.mubr.f32.mxu0 0.0
    %203 = vmatmul.mubr.f32.gmra.mxu0 %v106
    %v204 = vpop.f32.mrf.mxu0
    %v205 = vadd.f32 0.0, %v204
    %v206 = vpop.f32.mrf.mxu0
    %207 = vdwg.mxu0
    %v208 = vld [vmem:[%s2] sm:$0xff]
    %v209 = vld [vmem:[%s2 + $0x8] sm:$0xff]
    %v210 = vld [vmem:[%s2 + $0x10] sm:$0xff]
    %v211 = vld [vmem:[%s2 + $0x18] sm:$0xff]
    %v212 = vld [vmem:[%s2 + $0x20] sm:$0xff]
    %v213 = vrot.slane %v190, 1
    %v214 = vrot.slane %v195, 1
    %v215 = vrot.slane %v200, 1
    %v216 = vrot.slane %v205, 1
    %v217 = vlaneseq
    %v218 = vshrl.u32 %v217, 7
    %vm219 = vcmp.lt.s32.totalorder %v218, 7
    %v220 = vsel %vm219, %v215, %v216
    %v221 = vsel %vm219, %v214, %v215
    %v222 = vsel %vm219, %v213, %v214
    %v223 = vsel %vm219, %v216, %v213
    %s224 = scalar_lea.vmem %s2, 40
    %v225 = vld [vmem:[%s224] sm:$0xff]
    %v226 = vld [vmem:[%s224 + $0x8] sm:$0xff]
    %v227 = vld [vmem:[%s224 + $0x10] sm:$0xff]
    %v228 = vld [vmem:[%s224 + $0x18] sm:$0xff]
    %v229 = vld [vmem:[%s224 + $0x20] sm:$0xff]
    %vm230 = vcmask 326656
    %v232 = vsel %vm230, %v222, 0
    %v235 = vsel %vm230, %v221, 0
    %v238 = vsel %vm230, %v220, 0
    %v241 = vsel %vm230, %v223, 0
    %243 = vmatprep.subr.mxu0 0.0
    %244 = vmatpush1.msra.mxu0 0.0
    %245 = vmatprep.subr.mxu0 0.0
    %246 = vmatpush1.msra.mxu0 0.0
    %247 = vmatprep.subr.mxu0 0.0
    %248 = vmatpush1.msra.mxu0 0.0
    %249 = vmatprep.subr.mxu0 0.0
    %250 = vmatpush1.msra.mxu0 0.0
    %251 = vmatprep.subr.mxu0 0.0
    %252 = vmatpush1.msra.mxu0 0.0
    %253 = vmatprep.subr.mxu0 0.0
    %254 = vmatpush1.msra.mxu0 0.0
    %255 = vmatprep.subr.mxu0 0.0
    %256 = vmatpush1.msra.mxu0 0.0
    %257 = vmatprep.subr.mxu0 0.0
    %258 = vmatpush1.msra.mxu0 0.0
    %259 = vmatprep.subr.mxu0 0.0
    %260 = vmatpush1.msra.mxu0 0.0
    %261 = vmatprep.subr.mxu0 0.0
    %262 = vmatpush1.msra.mxu0 0.0
    %263 = vmatprep.subr.mxu0 0.0
    %264 = vmatpush1.msra.mxu0 0.0
    %265 = vmatprep.subr.mxu0 0.0
    %266 = vmatpush1.msra.mxu0 %v229
    %267 = vmatprep.subr.mxu0 0.0
    %268 = vmatpush1.msra.mxu0 %v228
    %269 = vmatprep.subr.mxu0 0.0
    %270 = vmatpush1.msra.mxu0 %v227
    %271 = vmatprep.subr.mxu0 0.0
    %272 = vmatpush1.msra.mxu0 %v226
    %273 = vmatprep.subr.mxu0 0.0
    %274 = vmatpush1.msra.mxu0 %v225
    %275 = vmatprep.subr.mxu0 0.0
    %276 = vmatpush2.msra.mxu0 0.0
    %277 = vmatprep.subr.mxu0 0.0
    %278 = vmatpush2.msra.mxu0 0.0
    %279 = vmatprep.subr.mxu0 0.0
    %280 = vmatpush2.msra.mxu0 0.0
    %281 = vmatprep.subr.mxu0 0.0
    %282 = vmatpush2.msra.mxu0 0.0
    %283 = vmatprep.subr.mxu0 0.0
    %284 = vmatpush2.msra.mxu0 0.0
    %285 = vmatprep.subr.mxu0 0.0
    %286 = vmatpush2.msra.mxu0 0.0
    %287 = vmatprep.subr.mxu0 0.0
    %288 = vmatpush2.msra.mxu0 0.0
    %289 = vmatprep.subr.mxu0 0.0
    %290 = vmatpush2.msra.mxu0 0.0
    %291 = vmatprep.subr.mxu0 0.0
    %292 = vmatpush2.msra.mxu0 0.0
    %293 = vmatprep.subr.mxu0 0.0
    %294 = vmatpush2.msra.mxu0 0.0
    %295 = vmatprep.subr.mxu0 0.0
    %296 = vmatpush2.msra.mxu0 0.0
    %297 = vmatprep.subr.mxu0 0.0
    %298 = vmatpush2.msra.mxu0 0.0
    %299 = vmatprep.subr.mxu0 0.0
    %300 = vmatpush2.msra.mxu0 0.0
    %301 = vmatprep.subr.mxu0 0.0
    %302 = vmatpush2.msra.mxu0 0.0
    %303 = vmatprep.subr.mxu0 0.0
    %304 = vmatpush2.msra.mxu0 0.0
    %305 = vmatprep.subr.mxu0 0.0
    %306 = vmatpush2.msra.mxu0 0.0
    %307 = vmatprep.mubr.f32.mxu0 0.0
    %308 = vmatmul.mubr.f32.gmra.mxu0 %v232
    %v309 = vpop.f32.mrf.mxu0
    %v310 = vadd.f32 0.0, %v309
    %v311 = vpop.f32.mrf.mxu0
    %312 = vmatprep.mubr.f32.mxu0 0.0
    %313 = vmatmul.mubr.f32.gmra.mxu0 %v235
    %v314 = vpop.f32.mrf.mxu0
    %v315 = vadd.f32 0.0, %v314
    %v316 = vpop.f32.mrf.mxu0
    %317 = vmatprep.mubr.f32.mxu0 0.0
    %318 = vmatmul.mubr.f32.gmra.mxu0 %v238
    %v319 = vpop.f32.mrf.mxu0
    %v320 = vadd.f32 0.0, %v319
    %v321 = vpop.f32.mrf.mxu0
    %322 = vmatprep.mubr.f32.mxu0 0.0
    %323 = vmatmul.mubr.f32.gmra.mxu0 %v241
    %v324 = vpop.f32.mrf.mxu0
    %v325 = vadd.f32 0.0, %v324
    %v326 = vpop.f32.mrf.mxu0
    %327 = vdwg.mxu0
    %v329 = vsel %vm230, %v190, 0
    %v332 = vsel %vm230, %v195, 0
    %v335 = vsel %vm230, %v200, 0
    %v338 = vsel %vm230, %v205, 0
    %340 = vmatprep.subr.mxu0 0.0
    %341 = vmatpush1.msra.mxu0 0.0
    %342 = vmatprep.subr.mxu0 0.0
    %343 = vmatpush1.msra.mxu0 0.0
    %344 = vmatprep.subr.mxu0 0.0
    %345 = vmatpush1.msra.mxu0 0.0
    %346 = vmatprep.subr.mxu0 0.0
    %347 = vmatpush1.msra.mxu0 0.0
    %348 = vmatprep.subr.mxu0 0.0
    %349 = vmatpush1.msra.mxu0 0.0
    %350 = vmatprep.subr.mxu0 0.0
    %351 = vmatpush1.msra.mxu0 0.0
    %352 = vmatprep.subr.mxu0 0.0
    %353 = vmatpush1.msra.mxu0 0.0
    %354 = vmatprep.subr.mxu0 0.0
    %355 = vmatpush1.msra.mxu0 0.0
    %356 = vmatprep.subr.mxu0 0.0
    %357 = vmatpush1.msra.mxu0 0.0
    %358 = vmatprep.subr.mxu0 0.0
    %359 = vmatpush1.msra.mxu0 0.0
    %360 = vmatprep.subr.mxu0 0.0
    %361 = vmatpush1.msra.mxu0 0.0
    %362 = vmatprep.subr.mxu0 0.0
    %363 = vmatpush1.msra.mxu0 %v212
    %364 = vmatprep.subr.mxu0 0.0
    %365 = vmatpush1.msra.mxu0 %v211
    %366 = vmatprep.subr.mxu0 0.0
    %367 = vmatpush1.msra.mxu0 %v210
    %368 = vmatprep.subr.mxu0 0.0
    %369 = vmatpush1.msra.mxu0 %v209
    %370 = vmatprep.subr.mxu0 0.0
    %371 = vmatpush1.msra.mxu0 %v208
    %372 = vmatprep.subr.mxu0 0.0
    %373 = vmatpush2.msra.mxu0 0.0
    %374 = vmatprep.subr.mxu0 0.0
    %375 = vmatpush2.msra.mxu0 0.0
    %376 = vmatprep.subr.mxu0 0.0
    %377 = vmatpush2.msra.mxu0 0.0
    %378 = vmatprep.subr.mxu0 0.0
    %379 = vmatpush2.msra.mxu0 0.0
    %380 = vmatprep.subr.mxu0 0.0
    %381 = vmatpush2.msra.mxu0 0.0
    %382 = vmatprep.subr.mxu0 0.0
    %383 = vmatpush2.msra.mxu0 0.0
    %384 = vmatprep.subr.mxu0 0.0
    %385 = vmatpush2.msra.mxu0 0.0
    %386 = vmatprep.subr.mxu0 0.0
    %387 = vmatpush2.msra.mxu0 0.0
    %388 = vmatprep.subr.mxu0 0.0
    %389 = vmatpush2.msra.mxu0 0.0
    %390 = vmatprep.subr.mxu0 0.0
    %391 = vmatpush2.msra.mxu0 0.0
    %392 = vmatprep.subr.mxu0 0.0
    %393 = vmatpush2.msra.mxu0 0.0
    %394 = vmatprep.subr.mxu0 0.0
    %395 = vmatpush2.msra.mxu0 0.0
    %396 = vmatprep.subr.mxu0 0.0
    %397 = vmatpush2.msra.mxu0 0.0
    %398 = vmatprep.subr.mxu0 0.0
    %399 = vmatpush2.msra.mxu0 0.0
    %400 = vmatprep.subr.mxu0 0.0
    %401 = vmatpush2.msra.mxu0 0.0
    %402 = vmatprep.subr.mxu0 0.0
    %403 = vmatpush2.msra.mxu0 0.0
    %404 = vmatprep.mubr.f32.mxu0 0.0
    %405 = vmatmul.mubr.f32.gmra.mxu0 %v329
    %v406 = vpop.f32.mrf.mxu0
    %v407 = vadd.f32 %v310, %v406
    %v408 = vpop.f32.mrf.mxu0
    %409 = vmatprep.mubr.f32.mxu0 0.0
    %410 = vmatmul.mubr.f32.gmra.mxu0 %v332
    %v411 = vpop.f32.mrf.mxu0
    %v412 = vadd.f32 %v315, %v411
    %v413 = vpop.f32.mrf.mxu0
    %414 = vmatprep.mubr.f32.mxu0 0.0
    %415 = vmatmul.mubr.f32.gmra.mxu0 %v335
    %v416 = vpop.f32.mrf.mxu0
    %v417 = vadd.f32 %v320, %v416
    %v418 = vpop.f32.mrf.mxu0
    %419 = vmatprep.mubr.f32.mxu0 0.0
    %420 = vmatmul.mubr.f32.gmra.mxu0 %v338
    %v421 = vpop.f32.mrf.mxu0
    %v422 = vadd.f32 %v325, %v421
    %v423 = vpop.f32.mrf.mxu0
    %424 = vdwg.mxu0
    %v425 = vrot.slane %v190, 2
    %v426 = vrot.slane %v195, 2
    %v427 = vrot.slane %v200, 2
    %v428 = vrot.slane %v205, 2
    %vm429 = vcmp.lt.s32.totalorder %v218, 6
    %v430 = vsel %vm429, %v427, %v428
    %v431 = vsel %vm429, %v426, %v427
    %v432 = vsel %vm429, %v425, %v426
    %v433 = vsel %vm429, %v428, %v425
    %s434 = scalar_lea.vmem %s2, 80
    %v435 = vld [vmem:[%s434] sm:$0xff]
    %v436 = vld [vmem:[%s434 + $0x8] sm:$0xff]
    %v437 = vld [vmem:[%s434 + $0x10] sm:$0xff]
    %v438 = vld [vmem:[%s434 + $0x18] sm:$0xff]
    %v439 = vld [vmem:[%s434 + $0x20] sm:$0xff]
    %v441 = vsel %vm230, %v432, 0
    %v444 = vsel %vm230, %v431, 0
    %v447 = vsel %vm230, %v430, 0
    %v450 = vsel %vm230, %v433, 0
    %452 = vmatprep.subr.mxu0 0.0
    %453 = vmatpush1.msra.mxu0 0.0
    %454 = vmatprep.subr.mxu0 0.0
    %455 = vmatpush1.msra.mxu0 0.0
    %456 = vmatprep.subr.mxu0 0.0
    %457 = vmatpush1.msra.mxu0 0.0
    %458 = vmatprep.subr.mxu0 0.0
    %459 = vmatpush1.msra.mxu0 0.0
    %460 = vmatprep.subr.mxu0 0.0
    %461 = vmatpush1.msra.mxu0 0.0
    %462 = vmatprep.subr.mxu0 0.0
    %463 = vmatpush1.msra.mxu0 0.0
    %464 = vmatprep.subr.mxu0 0.0
    %465 = vmatpush1.msra.mxu0 0.0
    %466 = vmatprep.subr.mxu0 0.0
    %467 = vmatpush1.msra.mxu0 0.0
    %468 = vmatprep.subr.mxu0 0.0
    %469 = vmatpush1.msra.mxu0 0.0
    %470 = vmatprep.subr.mxu0 0.0
    %471 = vmatpush1.msra.mxu0 0.0
    %472 = vmatprep.subr.mxu0 0.0
    %473 = vmatpush1.msra.mxu0 0.0
    %474 = vmatprep.subr.mxu0 0.0
    %475 = vmatpush1.msra.mxu0 %v439
    %476 = vmatprep.subr.mxu0 0.0
    %477 = vmatpush1.msra.mxu0 %v438
    %478 = vmatprep.subr.mxu0 0.0
    %479 = vmatpush1.msra.mxu0 %v437
    %480 = vmatprep.subr.mxu0 0.0
    %481 = vmatpush1.msra.mxu0 %v436
    %482 = vmatprep.subr.mxu0 0.0
    %483 = vmatpush1.msra.mxu0 %v435
    %484 = vmatprep.subr.mxu0 0.0
    %485 = vmatpush2.msra.mxu0 0.0
    %486 = vmatprep.subr.mxu0 0.0
    %487 = vmatpush2.msra.mxu0 0.0
    %488 = vmatprep.subr.mxu0 0.0
    %489 = vmatpush2.msra.mxu0 0.0
    %490 = vmatprep.subr.mxu0 0.0
    %491 = vmatpush2.msra.mxu0 0.0
    %492 = vmatprep.subr.mxu0 0.0
    %493 = vmatpush2.msra.mxu0 0.0
    %494 = vmatprep.subr.mxu0 0.0
    %495 = vmatpush2.msra.mxu0 0.0
    %496 = vmatprep.subr.mxu0 0.0
    %497 = vmatpush2.msra.mxu0 0.0
    %498 = vmatprep.subr.mxu0 0.0
    %499 = vmatpush2.msra.mxu0 0.0
    %500 = vmatprep.subr.mxu0 0.0
    %501 = vmatpush2.msra.mxu0 0.0
    %502 = vmatprep.subr.mxu0 0.0
    %503 = vmatpush2.msra.mxu0 0.0
    %504 = vmatprep.subr.mxu0 0.0
    %505 = vmatpush2.msra.mxu0 0.0
    %506 = vmatprep.subr.mxu0 0.0
    %507 = vmatpush2.msra.mxu0 0.0
    %508 = vmatprep.subr.mxu0 0.0
    %509 = vmatpush2.msra.mxu0 0.0
    %510 = vmatprep.subr.mxu0 0.0
    %511 = vmatpush2.msra.mxu0 0.0
    %512 = vmatprep.subr.mxu0 0.0
    %513 = vmatpush2.msra.mxu0 0.0
    %514 = vmatprep.subr.mxu0 0.0
    %515 = vmatpush2.msra.mxu0 0.0
    %516 = vmatprep.mubr.f32.mxu0 0.0
    %517 = vmatmul.mubr.f32.gmra.mxu0 %v441
    %v518 = vpop.f32.mrf.mxu0
    %v519 = vadd.f32 0.0, %v518
    %v520 = vpop.f32.mrf.mxu0
    %521 = vmatprep.mubr.f32.mxu0 0.0
    %522 = vmatmul.mubr.f32.gmra.mxu0 %v444
    %v523 = vpop.f32.mrf.mxu0
    %v524 = vadd.f32 0.0, %v523
    %v525 = vpop.f32.mrf.mxu0
    %526 = vmatprep.mubr.f32.mxu0 0.0
    %527 = vmatmul.mubr.f32.gmra.mxu0 %v447
    %v528 = vpop.f32.mrf.mxu0
    %v529 = vadd.f32 0.0, %v528
    %v530 = vpop.f32.mrf.mxu0
    %531 = vmatprep.mubr.f32.mxu0 0.0
    %532 = vmatmul.mubr.f32.gmra.mxu0 %v450
    %v533 = vpop.f32.mrf.mxu0
    %v534 = vadd.f32 0.0, %v533
    %v535 = vpop.f32.mrf.mxu0
    %536 = vdwg.mxu0
    %v537 = vadd.f32 %v407, %v519
    %v538 = vadd.f32 %v412, %v524
    %v539 = vadd.f32 %v417, %v529
    %v540 = vadd.f32 %v422, %v534
    %v541 = vrot.slane %v190, 3
    %v542 = vrot.slane %v195, 3
    %v543 = vrot.slane %v200, 3
    %v544 = vrot.slane %v205, 3
    %vm545 = vcmp.lt.s32.totalorder %v218, 5
    %v546 = vsel %vm545, %v543, %v544
    %v547 = vsel %vm545, %v542, %v543
    %v548 = vsel %vm545, %v541, %v542
    %v549 = vsel %vm545, %v544, %v541
    %s550 = scalar_lea.vmem %s2, 120
    %v551 = vld [vmem:[%s550] sm:$0xff]
    %v552 = vld [vmem:[%s550 + $0x8] sm:$0xff]
    %v553 = vld [vmem:[%s550 + $0x10] sm:$0xff]
    %v554 = vld [vmem:[%s550 + $0x18] sm:$0xff]
    %v555 = vld [vmem:[%s550 + $0x20] sm:$0xff]
    %v557 = vsel %vm230, %v548, 0
    %v560 = vsel %vm230, %v547, 0
    %v563 = vsel %vm230, %v546, 0
    %v566 = vsel %vm230, %v549, 0
    %568 = vmatprep.subr.mxu0 0.0
    %569 = vmatpush1.msra.mxu0 0.0
    %570 = vmatprep.subr.mxu0 0.0
    %571 = vmatpush1.msra.mxu0 0.0
    %572 = vmatprep.subr.mxu0 0.0
    %573 = vmatpush1.msra.mxu0 0.0
    %574 = vmatprep.subr.mxu0 0.0
    %575 = vmatpush1.msra.mxu0 0.0
    %576 = vmatprep.subr.mxu0 0.0
    %577 = vmatpush1.msra.mxu0 0.0
    %578 = vmatprep.subr.mxu0 0.0
    %579 = vmatpush1.msra.mxu0 0.0
    %580 = vmatprep.subr.mxu0 0.0
    %581 = vmatpush1.msra.mxu0 0.0
    %582 = vmatprep.subr.mxu0 0.0
    %583 = vmatpush1.msra.mxu0 0.0
    %584 = vmatprep.subr.mxu0 0.0
    %585 = vmatpush1.msra.mxu0 0.0
    %586 = vmatprep.subr.mxu0 0.0
    %587 = vmatpush1.msra.mxu0 0.0
    %588 = vmatprep.subr.mxu0 0.0
    %589 = vmatpush1.msra.mxu0 0.0
    %590 = vmatprep.subr.mxu0 0.0
    %591 = vmatpush1.msra.mxu0 %v555
    %592 = vmatprep.subr.mxu0 0.0
    %593 = vmatpush1.msra.mxu0 %v554
    %594 = vmatprep.subr.mxu0 0.0
    %595 = vmatpush1.msra.mxu0 %v553
    %596 = vmatprep.subr.mxu0 0.0
    %597 = vmatpush1.msra.mxu0 %v552
    %598 = vmatprep.subr.mxu0 0.0
    %599 = vmatpush1.msra.mxu0 %v551
    %600 = vmatprep.subr.mxu0 0.0
    %601 = vmatpush2.msra.mxu0 0.0
    %602 = vmatprep.subr.mxu0 0.0
    %603 = vmatpush2.msra.mxu0 0.0
    %604 = vmatprep.subr.mxu0 0.0
    %605 = vmatpush2.msra.mxu0 0.0
    %606 = vmatprep.subr.mxu0 0.0
    %607 = vmatpush2.msra.mxu0 0.0
    %608 = vmatprep.subr.mxu0 0.0
    %609 = vmatpush2.msra.mxu0 0.0
    %610 = vmatprep.subr.mxu0 0.0
    %611 = vmatpush2.msra.mxu0 0.0
    %612 = vmatprep.subr.mxu0 0.0
    %613 = vmatpush2.msra.mxu0 0.0
    %614 = vmatprep.subr.mxu0 0.0
    %615 = vmatpush2.msra.mxu0 0.0
    %616 = vmatprep.subr.mxu0 0.0
    %617 = vmatpush2.msra.mxu0 0.0
    %618 = vmatprep.subr.mxu0 0.0
    %619 = vmatpush2.msra.mxu0 0.0
    %620 = vmatprep.subr.mxu0 0.0
    %621 = vmatpush2.msra.mxu0 0.0
    %622 = vmatprep.subr.mxu0 0.0
    %623 = vmatpush2.msra.mxu0 0.0
    %624 = vmatprep.subr.mxu0 0.0
    %625 = vmatpush2.msra.mxu0 0.0
    %626 = vmatprep.subr.mxu0 0.0
    %627 = vmatpush2.msra.mxu0 0.0
    %628 = vmatprep.subr.mxu0 0.0
    %629 = vmatpush2.msra.mxu0 0.0
    %630 = vmatprep.subr.mxu0 0.0
    %631 = vmatpush2.msra.mxu0 0.0
    %632 = vmatprep.mubr.f32.mxu0 0.0
    %633 = vmatmul.mubr.f32.gmra.mxu0 %v557
    %v634 = vpop.f32.mrf.mxu0
    %v635 = vadd.f32 0.0, %v634
    %v636 = vpop.f32.mrf.mxu0
    %637 = vmatprep.mubr.f32.mxu0 0.0
    %638 = vmatmul.mubr.f32.gmra.mxu0 %v560
    %v639 = vpop.f32.mrf.mxu0
    %v640 = vadd.f32 0.0, %v639
    %v641 = vpop.f32.mrf.mxu0
    %642 = vmatprep.mubr.f32.mxu0 0.0
    %643 = vmatmul.mubr.f32.gmra.mxu0 %v563
    %v644 = vpop.f32.mrf.mxu0
    %v645 = vadd.f32 0.0, %v644
    %v646 = vpop.f32.mrf.mxu0
    %647 = vmatprep.mubr.f32.mxu0 0.0
    %648 = vmatmul.mubr.f32.gmra.mxu0 %v566
    %v649 = vpop.f32.mrf.mxu0
    %v650 = vadd.f32 0.0, %v649
    %v651 = vpop.f32.mrf.mxu0
    %652 = vdwg.mxu0
    %v653 = vadd.f32 %v537, %v635
    %v654 = vadd.f32 %v538, %v640
    %v655 = vadd.f32 %v539, %v645
    %v656 = vadd.f32 %v540, %v650
    %v657 = vrot.slane %v190, 4
    %v658 = vrot.slane %v195, 4
    %v659 = vrot.slane %v200, 4
    %v660 = vrot.slane %v205, 4
    %vm661 = vcmp.lt.s32.totalorder %v218, 4
    %v662 = vsel %vm661, %v659, %v660
    %v663 = vsel %vm661, %v658, %v659
    %v664 = vsel %vm661, %v657, %v658
    %v665 = vsel %vm661, %v660, %v657
    %s666 = scalar_lea.vmem %s2, 160
    %v667 = vld [vmem:[%s666] sm:$0xff]
    %v668 = vld [vmem:[%s666 + $0x8] sm:$0xff]
    %v669 = vld [vmem:[%s666 + $0x10] sm:$0xff]
    %v670 = vld [vmem:[%s666 + $0x18] sm:$0xff]
    %v671 = vld [vmem:[%s666 + $0x20] sm:$0xff]
    %v673 = vsel %vm230, %v664, 0
    %v676 = vsel %vm230, %v663, 0
    %v679 = vsel %vm230, %v662, 0
    %v682 = vsel %vm230, %v665, 0
    %684 = vmatprep.subr.mxu0 0.0
    %685 = vmatpush1.msra.mxu0 0.0
    %686 = vmatprep.subr.mxu0 0.0
    %687 = vmatpush1.msra.mxu0 0.0
    %688 = vmatprep.subr.mxu0 0.0
    %689 = vmatpush1.msra.mxu0 0.0
    %690 = vmatprep.subr.mxu0 0.0
    %691 = vmatpush1.msra.mxu0 0.0
    %692 = vmatprep.subr.mxu0 0.0
    %693 = vmatpush1.msra.mxu0 0.0
    %694 = vmatprep.subr.mxu0 0.0
    %695 = vmatpush1.msra.mxu0 0.0
    %696 = vmatprep.subr.mxu0 0.0
    %697 = vmatpush1.msra.mxu0 0.0
    %698 = vmatprep.subr.mxu0 0.0
    %699 = vmatpush1.msra.mxu0 0.0
    %700 = vmatprep.subr.mxu0 0.0
    %701 = vmatpush1.msra.mxu0 0.0
    %702 = vmatprep.subr.mxu0 0.0
    %703 = vmatpush1.msra.mxu0 0.0
    %704 = vmatprep.subr.mxu0 0.0
    %705 = vmatpush1.msra.mxu0 0.0
    %706 = vmatprep.subr.mxu0 0.0
    %707 = vmatpush1.msra.mxu0 %v671
    %708 = vmatprep.subr.mxu0 0.0
    %709 = vmatpush1.msra.mxu0 %v670
    %710 = vmatprep.subr.mxu0 0.0
    %711 = vmatpush1.msra.mxu0 %v669
    %712 = vmatprep.subr.mxu0 0.0
    %713 = vmatpush1.msra.mxu0 %v668
    %714 = vmatprep.subr.mxu0 0.0
    %715 = vmatpush1.msra.mxu0 %v667
    %716 = vmatprep.subr.mxu0 0.0
    %717 = vmatpush2.msra.mxu0 0.0
    %718 = vmatprep.subr.mxu0 0.0
    %719 = vmatpush2.msra.mxu0 0.0
    %720 = vmatprep.subr.mxu0 0.0
    %721 = vmatpush2.msra.mxu0 0.0
    %722 = vmatprep.subr.mxu0 0.0
    %723 = vmatpush2.msra.mxu0 0.0
    %724 = vmatprep.subr.mxu0 0.0
    %725 = vmatpush2.msra.mxu0 0.0
    %726 = vmatprep.subr.mxu0 0.0
    %727 = vmatpush2.msra.mxu0 0.0
    %728 = vmatprep.subr.mxu0 0.0
    %729 = vmatpush2.msra.mxu0 0.0
    %730 = vmatprep.subr.mxu0 0.0
    %731 = vmatpush2.msra.mxu0 0.0
    %732 = vmatprep.subr.mxu0 0.0
    %733 = vmatpush2.msra.mxu0 0.0
    %734 = vmatprep.subr.mxu0 0.0
    %735 = vmatpush2.msra.mxu0 0.0
    %736 = vmatprep.subr.mxu0 0.0
    %737 = vmatpush2.msra.mxu0 0.0
    %738 = vmatprep.subr.mxu0 0.0
    %739 = vmatpush2.msra.mxu0 0.0
    %740 = vmatprep.subr.mxu0 0.0
    %741 = vmatpush2.msra.mxu0 0.0
    %742 = vmatprep.subr.mxu0 0.0
    %743 = vmatpush2.msra.mxu0 0.0
    %744 = vmatprep.subr.mxu0 0.0
    %745 = vmatpush2.msra.mxu0 0.0
    %746 = vmatprep.subr.mxu0 0.0
    %747 = vmatpush2.msra.mxu0 0.0
    %748 = vmatprep.mubr.f32.mxu0 0.0
    %749 = vmatmul.mubr.f32.gmra.mxu0 %v673
    %v750 = vpop.f32.mrf.mxu0
    %v751 = vadd.f32 0.0, %v750
    %v752 = vpop.f32.mrf.mxu0
    %753 = vmatprep.mubr.f32.mxu0 0.0
    %754 = vmatmul.mubr.f32.gmra.mxu0 %v676
    %v755 = vpop.f32.mrf.mxu0
    %v756 = vadd.f32 0.0, %v755
    %v757 = vpop.f32.mrf.mxu0
    %758 = vmatprep.mubr.f32.mxu0 0.0
    %759 = vmatmul.mubr.f32.gmra.mxu0 %v679
    %v760 = vpop.f32.mrf.mxu0
    %v761 = vadd.f32 0.0, %v760
    %v762 = vpop.f32.mrf.mxu0
    %763 = vmatprep.mubr.f32.mxu0 0.0
    %764 = vmatmul.mubr.f32.gmra.mxu0 %v682
    %v765 = vpop.f32.mrf.mxu0
    %v766 = vadd.f32 0.0, %v765
    %v767 = vpop.f32.mrf.mxu0
    %768 = vdwg.mxu0
    %v769 = vadd.f32 %v653, %v751
    %v770 = vadd.f32 %v654, %v756
    %v771 = vadd.f32 %v655, %v761
    %v772 = vadd.f32 %v656, %v766
    %v773 = vrot.slane %v190, 5
    %v774 = vrot.slane %v195, 5
    %v775 = vrot.slane %v200, 5
    %v776 = vrot.slane %v205, 5
    %vm777 = vcmp.lt.s32.totalorder %v218, 3
    %v778 = vsel %vm777, %v775, %v776
    %v779 = vsel %vm777, %v774, %v775
    %v780 = vsel %vm777, %v773, %v774
    %v781 = vsel %vm777, %v776, %v773
    %s782 = scalar_lea.vmem %s2, 200
    %v783 = vld [vmem:[%s782] sm:$0xff]
    %v784 = vld [vmem:[%s782 + $0x8] sm:$0xff]
    %v785 = vld [vmem:[%s782 + $0x10] sm:$0xff]
    %v786 = vld [vmem:[%s782 + $0x18] sm:$0xff]
    %v787 = vld [vmem:[%s782 + $0x20] sm:$0xff]
    %v789 = vsel %vm230, %v780, 0
    %v792 = vsel %vm230, %v779, 0
    %v795 = vsel %vm230, %v778, 0
    %v798 = vsel %vm230, %v781, 0
    %800 = vmatprep.subr.mxu0 0.0
    %801 = vmatpush1.msra.mxu0 0.0
    %802 = vmatprep.subr.mxu0 0.0
    %803 = vmatpush1.msra.mxu0 0.0
    %804 = vmatprep.subr.mxu0 0.0
    %805 = vmatpush1.msra.mxu0 0.0
    %806 = vmatprep.subr.mxu0 0.0
    %807 = vmatpush1.msra.mxu0 0.0
    %808 = vmatprep.subr.mxu0 0.0
    %809 = vmatpush1.msra.mxu0 0.0
    %810 = vmatprep.subr.mxu0 0.0
    %811 = vmatpush1.msra.mxu0 0.0
    %812 = vmatprep.subr.mxu0 0.0
    %813 = vmatpush1.msra.mxu0 0.0
    %814 = vmatprep.subr.mxu0 0.0
    %815 = vmatpush1.msra.mxu0 0.0
    %816 = vmatprep.subr.mxu0 0.0
    %817 = vmatpush1.msra.mxu0 0.0
    %818 = vmatprep.subr.mxu0 0.0
    %819 = vmatpush1.msra.mxu0 0.0
    %820 = vmatprep.subr.mxu0 0.0
    %821 = vmatpush1.msra.mxu0 0.0
    %822 = vmatprep.subr.mxu0 0.0
    %823 = vmatpush1.msra.mxu0 %v787
    %824 = vmatprep.subr.mxu0 0.0
    %825 = vmatpush1.msra.mxu0 %v786
    %826 = vmatprep.subr.mxu0 0.0
    %827 = vmatpush1.msra.mxu0 %v785
    %828 = vmatprep.subr.mxu0 0.0
    %829 = vmatpush1.msra.mxu0 %v784
    %830 = vmatprep.subr.mxu0 0.0
    %831 = vmatpush1.msra.mxu0 %v783
    %832 = vmatprep.subr.mxu0 0.0
    %833 = vmatpush2.msra.mxu0 0.0
    %834 = vmatprep.subr.mxu0 0.0
    %835 = vmatpush2.msra.mxu0 0.0
    %836 = vmatprep.subr.mxu0 0.0
    %837 = vmatpush2.msra.mxu0 0.0
    %838 = vmatprep.subr.mxu0 0.0
    %839 = vmatpush2.msra.mxu0 0.0
    %840 = vmatprep.subr.mxu0 0.0
    %841 = vmatpush2.msra.mxu0 0.0
    %842 = vmatprep.subr.mxu0 0.0
    %843 = vmatpush2.msra.mxu0 0.0
    %844 = vmatprep.subr.mxu0 0.0
    %845 = vmatpush2.msra.mxu0 0.0
    %846 = vmatprep.subr.mxu0 0.0
    %847 = vmatpush2.msra.mxu0 0.0
    %848 = vmatprep.subr.mxu0 0.0
    %849 = vmatpush2.msra.mxu0 0.0
    %850 = vmatprep.subr.mxu0 0.0
    %851 = vmatpush2.msra.mxu0 0.0
    %852 = vmatprep.subr.mxu0 0.0
    %853 = vmatpush2.msra.mxu0 0.0
    %854 = vmatprep.subr.mxu0 0.0
    %855 = vmatpush2.msra.mxu0 0.0
    %856 = vmatprep.subr.mxu0 0.0
    %857 = vmatpush2.msra.mxu0 0.0
    %858 = vmatprep.subr.mxu0 0.0
    %859 = vmatpush2.msra.mxu0 0.0
    %860 = vmatprep.subr.mxu0 0.0
    %861 = vmatpush2.msra.mxu0 0.0
    %862 = vmatprep.subr.mxu0 0.0
    %863 = vmatpush2.msra.mxu0 0.0
    %864 = vmatprep.mubr.f32.mxu0 0.0
    %865 = vmatmul.mubr.f32.gmra.mxu0 %v789
    %v866 = vpop.f32.mrf.mxu0
    %v867 = vadd.f32 0.0, %v866
    %v868 = vpop.f32.mrf.mxu0
    %869 = vmatprep.mubr.f32.mxu0 0.0
    %870 = vmatmul.mubr.f32.gmra.mxu0 %v792
    %v871 = vpop.f32.mrf.mxu0
    %v872 = vadd.f32 0.0, %v871
    %v873 = vpop.f32.mrf.mxu0
    %874 = vmatprep.mubr.f32.mxu0 0.0
    %875 = vmatmul.mubr.f32.gmra.mxu0 %v795
    %v876 = vpop.f32.mrf.mxu0
    %v877 = vadd.f32 0.0, %v876
    %v878 = vpop.f32.mrf.mxu0
    %879 = vmatprep.mubr.f32.mxu0 0.0
    %880 = vmatmul.mubr.f32.gmra.mxu0 %v798
    %v881 = vpop.f32.mrf.mxu0
    %v882 = vadd.f32 0.0, %v881
    %v883 = vpop.f32.mrf.mxu0
    %884 = vdwg.mxu0
    %v885 = vadd.f32 %v769, %v867
    %v886 = vadd.f32 %v770, %v872
    %v887 = vadd.f32 %v771, %v877
    %v888 = vadd.f32 %v772, %v882
    %v889 = vrot.slane %v190, 6
    %v890 = vrot.slane %v195, 6
    %v891 = vrot.slane %v200, 6
    %v892 = vrot.slane %v205, 6
    %vm893 = vcmp.lt.s32.totalorder %v218, 2
    %v894 = vsel %vm893, %v891, %v892
    %v895 = vsel %vm893, %v890, %v891
    %v896 = vsel %vm893, %v889, %v890
    %v897 = vsel %vm893, %v892, %v889
    %s898 = scalar_lea.vmem %s2, 240
    %v899 = vld [vmem:[%s898] sm:$0xff]
    %v900 = vld [vmem:[%s898 + $0x8] sm:$0xff]
    %v901 = vld [vmem:[%s898 + $0x10] sm:$0xff]
    %v902 = vld [vmem:[%s898 + $0x18] sm:$0xff]
    %v903 = vld [vmem:[%s898 + $0x20] sm:$0xff]
    %v905 = vsel %vm230, %v896, 0
    %v908 = vsel %vm230, %v895, 0
    %v911 = vsel %vm230, %v894, 0
    %v914 = vsel %vm230, %v897, 0
    %916 = vmatprep.subr.mxu0 0.0
    %917 = vmatpush1.msra.mxu0 0.0
    %918 = vmatprep.subr.mxu0 0.0
    %919 = vmatpush1.msra.mxu0 0.0
    %920 = vmatprep.subr.mxu0 0.0
    %921 = vmatpush1.msra.mxu0 0.0
    %922 = vmatprep.subr.mxu0 0.0
    %923 = vmatpush1.msra.mxu0 0.0
    %924 = vmatprep.subr.mxu0 0.0
    %925 = vmatpush1.msra.mxu0 0.0
    %926 = vmatprep.subr.mxu0 0.0
    %927 = vmatpush1.msra.mxu0 0.0
    %928 = vmatprep.subr.mxu0 0.0
    %929 = vmatpush1.msra.mxu0 0.0
    %930 = vmatprep.subr.mxu0 0.0
    %931 = vmatpush1.msra.mxu0 0.0
    %932 = vmatprep.subr.mxu0 0.0
    %933 = vmatpush1.msra.mxu0 0.0
    %934 = vmatprep.subr.mxu0 0.0
    %935 = vmatpush1.msra.mxu0 0.0
    %936 = vmatprep.subr.mxu0 0.0
    %937 = vmatpush1.msra.mxu0 0.0
    %938 = vmatprep.subr.mxu0 0.0
    %939 = vmatpush1.msra.mxu0 %v903
    %940 = vmatprep.subr.mxu0 0.0
    %941 = vmatpush1.msra.mxu0 %v902
    %942 = vmatprep.subr.mxu0 0.0
    %943 = vmatpush1.msra.mxu0 %v901
    %944 = vmatprep.subr.mxu0 0.0
    %945 = vmatpush1.msra.mxu0 %v900
    %946 = vmatprep.subr.mxu0 0.0
    %947 = vmatpush1.msra.mxu0 %v899
    %948 = vmatprep.subr.mxu0 0.0
    %949 = vmatpush2.msra.mxu0 0.0
    %950 = vmatprep.subr.mxu0 0.0
    %951 = vmatpush2.msra.mxu0 0.0
    %952 = vmatprep.subr.mxu0 0.0
    %953 = vmatpush2.msra.mxu0 0.0
    %954 = vmatprep.subr.mxu0 0.0
    %955 = vmatpush2.msra.mxu0 0.0
    %956 = vmatprep.subr.mxu0 0.0
    %957 = vmatpush2.msra.mxu0 0.0
    %958 = vmatprep.subr.mxu0 0.0
    %959 = vmatpush2.msra.mxu0 0.0
    %960 = vmatprep.subr.mxu0 0.0
    %961 = vmatpush2.msra.mxu0 0.0
    %962 = vmatprep.subr.mxu0 0.0
    %963 = vmatpush2.msra.mxu0 0.0
    %964 = vmatprep.subr.mxu0 0.0
    %965 = vmatpush2.msra.mxu0 0.0
    %966 = vmatprep.subr.mxu0 0.0
    %967 = vmatpush2.msra.mxu0 0.0
    %968 = vmatprep.subr.mxu0 0.0
    %969 = vmatpush2.msra.mxu0 0.0
    %970 = vmatprep.subr.mxu0 0.0
    %971 = vmatpush2.msra.mxu0 0.0
    %972 = vmatprep.subr.mxu0 0.0
    %973 = vmatpush2.msra.mxu0 0.0
    %974 = vmatprep.subr.mxu0 0.0
    %975 = vmatpush2.msra.mxu0 0.0
    %976 = vmatprep.subr.mxu0 0.0
    %977 = vmatpush2.msra.mxu0 0.0
    %978 = vmatprep.subr.mxu0 0.0
    %979 = vmatpush2.msra.mxu0 0.0
    %980 = vmatprep.mubr.f32.mxu0 0.0
    %981 = vmatmul.mubr.f32.gmra.mxu0 %v905
    %v982 = vpop.f32.mrf.mxu0
    %v983 = vadd.f32 0.0, %v982
    %v984 = vpop.f32.mrf.mxu0
    %985 = vmatprep.mubr.f32.mxu0 0.0
    %986 = vmatmul.mubr.f32.gmra.mxu0 %v908
    %v987 = vpop.f32.mrf.mxu0
    %v988 = vadd.f32 0.0, %v987
    %v989 = vpop.f32.mrf.mxu0
    %990 = vmatprep.mubr.f32.mxu0 0.0
    %991 = vmatmul.mubr.f32.gmra.mxu0 %v911
    %v992 = vpop.f32.mrf.mxu0
    %v993 = vadd.f32 0.0, %v992
    %v994 = vpop.f32.mrf.mxu0
    %995 = vmatprep.mubr.f32.mxu0 0.0
    %996 = vmatmul.mubr.f32.gmra.mxu0 %v914
    %v997 = vpop.f32.mrf.mxu0
    %v998 = vadd.f32 0.0, %v997
    %v999 = vpop.f32.mrf.mxu0
    %1000 = vdwg.mxu0
    %v1001 = vadd.f32 %v885, %v983
    %v1002 = vadd.f32 %v886, %v988
    %v1003 = vadd.f32 %v887, %v993
    %v1004 = vadd.f32 %v888, %v998
    %v1005 = vadd.s32 %v218, 8
    %vm1006 = vcmp.lt.s32.totalorder %v26, 32
    %vm1007 = vcmp.lt.s32.totalorder %v26, 64
    %v1008 = vsel %vm1007, 12, 10
    %v1009 = vsel %vm1006, 14, %v1008
    %vm1010 = vcmp.lt.s32.totalorder %v218, %v1009
    %vm1011 = vcmp.lt.s32.totalorder %v1005, %v1009
    %v1012 = vsel %vm1010, 1, 0
    %v1013 = vsel %vm1011, 1, 0
    %vm1014 = vcmp.eq.s32.totalorder %v1012, 1
    %vm1015 = vcmp.eq.s32.totalorder %v1013, 1
    %v1016 = vsel %vm1014, %v1001, -1e+30
    %v1017 = vsel %vm1015, %v1002, -1e+30
    %v1018 = vsel %vm1014, %v1003, -1e+30
    %v1019 = vsel %vm1015, %v1004, -1e+30
    %vm1020 = vcmask 785408
    %v1021 = vsel %vm1020, %v1016, -inf
    %v1022 = vsel %vm1020, %v1017, -inf
    %v1023 = vmax.f32 %v1021, %v1022
    %v1024 = vrot.slane %v1023, 4
    %v1025 = vmax.f32 %v1023, %v1024
    %v1026 = vrot.slane %v1025, 2
    %v1027 = vmax.f32 %v1025, %v1026
    %v1028 = vrot.slane %v1027, 1
    %v1029 = vmax.f32 %v1027, %v1028
    %v1030 = vsel %vm1020, %v1018, -inf
    %v1031 = vsel %vm1020, %v1019, -inf
    %v1032 = vmax.f32 %v1030, %v1031
    %v1033 = vrot.slane %v1032, 4
    %v1034 = vmax.f32 %v1032, %v1033
    %v1035 = vrot.slane %v1034, 2
    %v1036 = vmax.f32 %v1034, %v1035
    %v1037 = vrot.slane %v1036, 1
    %v1038 = vmax.f32 %v1036, %v1037
    %v1039 = vld [vmem:[%s3] sm:$0x1]
    %v1041 = vlaneseq
    %v1042 = vshrl.u32 %v1041, 7
    %v1043 = vsub.s32 0, %v1042
    %v1044 = vrot.slane %v1039, %v1043
    %v1046 = vadd.f32 %v1029, %v1044
    %v1047 = vadd.f32 %v1038, %v1044
    %v1048 = vtanh.pop %v1046
    %v1049 = vtanh.pop %v1047
    %v1050 = vld [vmem:[%s4] sm:$0xff]
    %v1051 = vld [vmem:[%s4 + $0x8] sm:$0xff]
    %v1052 = vld [vmem:[%s4 + $0x10] sm:$0xff]
    %v1053 = vld [vmem:[%s4 + $0x18] sm:$0xff]
    %v1054 = vld [vmem:[%s4 + $0x20] sm:$0xff]
    %v1055 = vld [vmem:[%s4 + $0x28] sm:$0xff]
    %v1056 = vld [vmem:[%s4 + $0x30] sm:$0xff]
    %v1057 = vld [vmem:[%s4 + $0x38] sm:$0xff]
    %v1058 = vld [vmem:[%s4 + $0x40] sm:$0xff]
    %v1059 = vld [vmem:[%s4 + $0x48] sm:$0xff]
    %v1060 = vld [vmem:[%s4 + $0x50] sm:$0xff]
    %v1061 = vld [vmem:[%s4 + $0x58] sm:$0xff]
    %v1064 = vrot.slane %v1049, 7
    %vm1065 = vcmask 1041409
    %v1066 = vsel %vm1065, %v1064, %v1048
    %v1067 = vsel %vm1020, %v1066, 0
    %1069 = vmatprep.subr.mxu0 0.0
    %1070 = vmatpush1.msra.mxu0 0.0
    %1071 = vmatprep.subr.mxu0 0.0
    %1072 = vmatpush1.msra.mxu0 0.0
    %1073 = vmatprep.subr.mxu0 0.0
    %1074 = vmatpush1.msra.mxu0 0.0
    %1075 = vmatprep.subr.mxu0 0.0
    %1076 = vmatpush1.msra.mxu0 0.0
    %1077 = vmatprep.subr.mxu0 0.0
    %1078 = vmatpush1.msra.mxu0 %v1061
    %1079 = vmatprep.subr.mxu0 0.0
    %1080 = vmatpush1.msra.mxu0 %v1060
    %1081 = vmatprep.subr.mxu0 0.0
    %1082 = vmatpush1.msra.mxu0 %v1059
    %1083 = vmatprep.subr.mxu0 0.0
    %1084 = vmatpush1.msra.mxu0 %v1058
    %1085 = vmatprep.subr.mxu0 0.0
    %1086 = vmatpush1.msra.mxu0 %v1057
    %1087 = vmatprep.subr.mxu0 0.0
    %1088 = vmatpush1.msra.mxu0 %v1056
    %1089 = vmatprep.subr.mxu0 0.0
    %1090 = vmatpush1.msra.mxu0 %v1055
    %1091 = vmatprep.subr.mxu0 0.0
    %1092 = vmatpush1.msra.mxu0 %v1054
    %1093 = vmatprep.subr.mxu0 0.0
    %1094 = vmatpush1.msra.mxu0 %v1053
    %1095 = vmatprep.subr.mxu0 0.0
    %1096 = vmatpush1.msra.mxu0 %v1052
    %1097 = vmatprep.subr.mxu0 0.0
    %1098 = vmatpush1.msra.mxu0 %v1051
    %1099 = vmatprep.subr.mxu0 0.0
    %1100 = vmatpush1.msra.mxu0 %v1050
    %1101 = vmatprep.subr.mxu0 0.0
    %1102 = vmatpush2.msra.mxu0 0.0
    %1103 = vmatprep.subr.mxu0 0.0
    %1104 = vmatpush2.msra.mxu0 0.0
    %1105 = vmatprep.subr.mxu0 0.0
    %1106 = vmatpush2.msra.mxu0 0.0
    %1107 = vmatprep.subr.mxu0 0.0
    %1108 = vmatpush2.msra.mxu0 0.0
    %1109 = vmatprep.subr.mxu0 0.0
    %1110 = vmatpush2.msra.mxu0 0.0
    %1111 = vmatprep.subr.mxu0 0.0
    %1112 = vmatpush2.msra.mxu0 0.0
    %1113 = vmatprep.subr.mxu0 0.0
    %1114 = vmatpush2.msra.mxu0 0.0
    %1115 = vmatprep.subr.mxu0 0.0
    %1116 = vmatpush2.msra.mxu0 0.0
    %1117 = vmatprep.subr.mxu0 0.0
    %1118 = vmatpush2.msra.mxu0 0.0
    %1119 = vmatprep.subr.mxu0 0.0
    %1120 = vmatpush2.msra.mxu0 0.0
    %1121 = vmatprep.subr.mxu0 0.0
    %1122 = vmatpush2.msra.mxu0 0.0
    %1123 = vmatprep.subr.mxu0 0.0
    %1124 = vmatpush2.msra.mxu0 0.0
    %1125 = vmatprep.subr.mxu0 0.0
    %1126 = vmatpush2.msra.mxu0 0.0
    %1127 = vmatprep.subr.mxu0 0.0
    %1128 = vmatpush2.msra.mxu0 0.0
    %1129 = vmatprep.subr.mxu0 0.0
    %1130 = vmatpush2.msra.mxu0 0.0
    %1131 = vmatprep.subr.mxu0 0.0
    %1132 = vmatpush2.msra.mxu0 0.0
    %1133 = vmatprep.mubr.f32.mxu0 0.0
    %1134 = vmatmul.mubr.f32.gmra.mxu0 %v1067
    %v1135 = vpop.f32.mrf.mxu0
    %v1136 = vadd.f32 0.0, %v1135
    %v1137 = vpop.f32.mrf.mxu0
    %1138 = vdwg.mxu0
    %vm1139 = vcmask 58368
    %1140 = vst.msk [vmem:[#allocation2] sm:$0x3] %vm1139, %v1136
    // Predicated region
    $region22: #{tpu_custom_call.1} parent=1 // pred_check
      _
    $region23: #{tpu_custom_call.1} parent=1 // pred_check_branch
      %1142 = sbr.rel (0) target = $region25
    $region24: #{tpu_custom_call.1} parent=1 // pred_region
      %s1144 = ssub.s32 32, 32
      %1145 = vsyncadd [#allocation3], %s1144
      %s1147 = sshll.u32 [#allocation2], 4
      %s1148 = int_to_ptr.vmem [resolvable:$true] %s1147
      %1150 = dma.vmem_to_hbm [thread:$0]  %s1148, 32, %s5, [#allocation3]
    $region25: #{tpu_custom_call.1} parent=1 // pred_fallthru
      _
    // Predicated region
    $region26: #{tpu_custom_call.1} parent=1 // pred_check
      _
    $region27: #{tpu_custom_call.1} parent=1 // pred_check_branch
      %1152 = sbr.rel (0) target = $region29
    $region28: #{tpu_custom_call.1} parent=1 // pred_region
      %1153 = dma.done [#allocation3], 32
    $region29: #{tpu_custom_call.1} parent=1 // pred_fallthru
      _
    %1154 = vsyncpa [#allocation3], 1

</llo_original>
